<compile_context>
chip_gen: v7x
topology: tpu7x:2x2x1
jax: 0.10.0
libtpu: 0.0.40
codegen_flags: <defaults>
</compile_context>

<pallas_src>
import jax
import jax.numpy as jnp
from jax.experimental import pallas as pl
from jax.experimental.pallas import tpu as pltpu

LANE = 128


# ----------------------- Fused Linear + LI readout kernel ---------------------

def _readout_fc_li_kernel(x_ref, w_ref, b_ref, d_ref, mem_ref):
    # x_ref  : (T*B, D_in)   bf16 spikes, time-major rows (row = t*B + b)
    # w_ref  : (D_in, Dp)    bf16 transposed, lane-padded weight
    # b_ref  : (1, Dp)       f32 lane-padded bias
    # d_ref  : (T*B, T*B)    f32 block-lower-triangular decay matrix
    #                        d[t*B+b, s*B+b] = beta**(t-s) for s<=t, else 0
    # mem_ref: (T*B, Dp)     f32 membrane-potential trace (lane-dense output)

    # Linear1d: one MXU matmul for all time steps (stateless layer), f32 acc.
    cur = jnp.dot(x_ref[...], w_ref[...], preferred_element_type=jnp.float32)
    cur = cur + b_ref[...]                       # broadcast bias over rows

    # LI1d recurrence as a second MXU matmul:
    #   mem[t] = sum_{s<=t} beta^(t-s) * cur[s]
    # replaces the serial T-step VPU chain and T masked partial stores with a
    # single vmatmul + one bulk, full-lane store.
    mem = jnp.dot(d_ref[...], cur, preferred_element_type=jnp.float32)
    mem_ref[...] = mem.astype(mem_ref.dtype)


def readout_fc_block_forward(x_tbd, weight, bias, *, beta_out=0.95):
    """x_tbd: (T, B, D_in) time-major input spikes/activations.
    weight: (D_out, D_in) (PyTorch nn.Linear layout); bias: (D_out,).
    Returns the LI readout membrane trace of shape (T, B, D_out)."""
    T, B, D_in = x_tbd.shape
    D_out = weight.shape[0]
    M = T * B
    Dp = max(LANE, pl.cdiv(D_out, LANE) * LANE)  # lane-dense output width

    # Host-side layout plumbing (free): fold time into the matmul M dimension,
    # cast 0/1 spikes to bf16 (exact), pre-transpose + lane-pad the weight,
    # lane-pad the bias.
    x2d = x_tbd.reshape(M, D_in).astype(jnp.bfloat16)
    w_t = jnp.transpose(weight).astype(jnp.bfloat16)            # (D_in, D_out)
    w_t = jnp.pad(w_t, ((0, 0), (0, Dp - D_out)))                # (D_in, Dp)
    b2 = jnp.pad(bias.astype(jnp.float32), (0, Dp - D_out)).reshape(1, Dp)

    # Block-lower-triangular decay matrix  D = kron(powers, I_B),
    # powers[t, s] = beta^(t-s) for s<=t else 0. Computed with traced jnp ops,
    # so a different beta does not force a kernel recompile.
    dt = jnp.arange(T)[:, None] - jnp.arange(T)[None, :]
    powers = jnp.where(
        dt >= 0,
        jnp.float32(beta_out) ** jnp.maximum(dt, 0).astype(jnp.float32),
        jnp.float32(0.0),
    )
    decay = jnp.kron(powers, jnp.eye(B, dtype=jnp.float32))      # (M, M) f32

    mem2d = pl.pallas_call(
        _readout_fc_li_kernel,
        out_shape=jax.ShapeDtypeStruct((M, Dp), jnp.float32),
        grid_spec=pltpu.PrefetchScalarGridSpec(
            num_scalar_prefetch=0,
            grid=(1,),                          # whole problem VMEM-resident
            in_specs=[
                pl.BlockSpec((M, D_in), lambda i: (0, 0)),
                pl.BlockSpec((D_in, Dp), lambda i: (0, 0)),
                pl.BlockSpec((1, Dp), lambda i: (0, 0)),
                pl.BlockSpec((M, M), lambda i: (0, 0)),
            ],
            out_specs=pl.BlockSpec((M, Dp), lambda i: (0, 0)),
        ),
        compiler_params=pltpu.CompilerParams(
            dimension_semantics=("arbitrary",)),
    )(x2d, w_t, b2, decay)

    return mem2d[:, :D_out].reshape(T, B, D_out)


# ----------------------------------- main -------------------------------------

if __name__ == "__main__":
    # Small shapes consistent with a readout FC block.
    T, B = 8, 16                # nb_steps, batch
    D_in, D_out = 128, 32       # input_dim (hidden feeding readout), output_dim

    key = jax.random.PRNGKey(0)
    kx, kw, kb = jax.random.split(key, 3)

    # Input spikes from the previous hidden layer: (T, B, D_in).
    x = jax.random.bernoulli(kx, p=0.3, shape=(T, B, D_in)).astype(jnp.float32)

    # Deterministic init mirroring init_weights(weight_init_dist='uniform_'):
    #   bound = weight_gain / sqrt(input_dim), weight_gain = 1.0
    w_bound = 1.0 / jnp.sqrt(jnp.float32(D_in))
    weight = jax.random.uniform(kw, (D_out, D_in), jnp.float32,
                                minval=-w_bound, maxval=w_bound)
    bias = jax.random.uniform(kb, (D_out,), jnp.float32,
                              minval=-w_bound, maxval=w_bound)

    beta_out = 0.95
    mem = readout_fc_block_forward(x, weight, bias, beta_out=beta_out)
    jax.block_until_ready(mem)
    assert mem.shape == (T, B, D_out)

    # Pure-JAX references (same forward semantics, sequential scan).
    def li_scan(cur):
        def _step(m, c):
            m = beta_out * m + c
            return m, m
        _, trace = jax.lax.scan(_step, jnp.zeros((B, D_out), jnp.float32), cur)
        return trace

    # (a) reference using the same bf16-rounded weights the kernel consumes
    #     (isolates kernel correctness from the quantization choice).
    w_bf = weight.astype(jnp.bfloat16).astype(jnp.float32)
    cur_bf = jnp.einsum('tbi,oi->tbo', x, w_bf,
                        precision=jax.lax.Precision.HIGHEST) + bias
    mem_ref_bf = li_scan(cur_bf)
    err_bf = float(jnp.max(jnp.abs(mem - mem_ref_bf)))
    assert jnp.allclose(mem, mem_ref_bf, rtol=1e-2, atol=1e-2), err_bf

    # (b) reference against the original f32 module semantics (documents the
    #     impact of the bf16 weight cast; x is exact 0/1 so it adds no error).
    cur_f32 = jnp.einsum('tbi,oi->tbo', x, weight,
                         precision=jax.lax.Precision.HIGHEST) + bias
    mem_ref_f32 = li_scan(cur_f32)
    err_f32 = float(jnp.max(jnp.abs(mem - mem_ref_f32)))
    assert jnp.allclose(mem, mem_ref_f32, rtol=2e-2, atol=2e-2), err_f32

    print("KERNEL_OK")
</pallas_src>

<mosaic_0001>
module attributes {stable_mosaic.version = 11 : i64} {
  func.func @_readout_fc_li_kernel(%arg0: i32, %arg1: memref<128x128xbf16, #tpu.memory_space<vmem>>, %arg2: memref<128x128xbf16, #tpu.memory_space<vmem>>, %arg3: memref<1x128xf32, #tpu.memory_space<vmem>>, %arg4: memref<128x128xf32, #tpu.memory_space<vmem>>, %arg5: memref<128x128xf32, #tpu.memory_space<vmem>>) attributes {dimension_semantics = [#tpu.dimension_semantics<arbitrary>], iteration_bounds = array<i64: 1>, scalar_prefetch = 0 : i64, scratch_operands = 0 : i64, tpu.core_type = #tpu.core_type<tc>, window_params = [{pipeline_mode = #tpu.pipeline_mode<synchronous>, transform_indices = @transform_0, window_bounds = array<i64: 128, 128>}, {pipeline_mode = #tpu.pipeline_mode<synchronous>, transform_indices = @transform_1, window_bounds = array<i64: 128, 128>}, {pipeline_mode = #tpu.pipeline_mode<synchronous>, transform_indices = @transform_2, window_bounds = array<i64: 1, 128>}, {pipeline_mode = #tpu.pipeline_mode<synchronous>, transform_indices = @transform_3, window_bounds = array<i64: 128, 128>}, {pipeline_mode = #tpu.pipeline_mode<synchronous>, transform_indices = @transform_4, window_bounds = array<i64: 128, 128>}]} {
    %c0 = arith.constant 0 : index
    %c0_0 = arith.constant 0 : index
    %0 = vector.load %arg1[%c0, %c0_0] : memref<128x128xbf16, #tpu.memory_space<vmem>>, vector<128x128xbf16>
    %c0_1 = arith.constant 0 : index
    %c0_2 = arith.constant 0 : index
    %1 = vector.load %arg2[%c0_1, %c0_2] : memref<128x128xbf16, #tpu.memory_space<vmem>>, vector<128x128xbf16>
    %cst = arith.constant dense<0.000000e+00> : vector<128x128xf32>
    %2 = tpu.matmul %0, %1, %cst {dimension_numbers = #tpu.dot_dimension_numbers<[1], [0], [0], [1], [0, 0, 1, 1], [], []>} : vector<128x128xbf16>, vector<128x128xbf16>, vector<128x128xf32> -> vector<128x128xf32>
    %c0_3 = arith.constant 0 : index
    %c0_4 = arith.constant 0 : index
    %3 = vector.load %arg3[%c0_3, %c0_4] : memref<1x128xf32, #tpu.memory_space<vmem>>, vector<1x128xf32>
    %4 = vector.broadcast %3 : vector<1x128xf32> to vector<128x128xf32>
    %5 = arith.addf %2, %4 : vector<128x128xf32>
    %c0_5 = arith.constant 0 : index
    %c0_6 = arith.constant 0 : index
    %6 = vector.load %arg4[%c0_5, %c0_6] : memref<128x128xf32, #tpu.memory_space<vmem>>, vector<128x128xf32>
    %cst_7 = arith.constant dense<0.000000e+00> : vector<128x128xf32>
    %7 = tpu.matmul %6, %5, %cst_7 {dimension_numbers = #tpu.dot_dimension_numbers<[1], [0], [0], [1], [0, 0, 1, 1], [], []>} : vector<128x128xf32>, vector<128x128xf32>, vector<128x128xf32> -> vector<128x128xf32>
    %c0_8 = arith.constant 0 : index
    %c0_9 = arith.constant 0 : index
    %8 = vector.load %arg5[%c0_8, %c0_9] : memref<128x128xf32, #tpu.memory_space<vmem>>, vector<128x128xf32>
    tpu.vector_store %arg5[%c0_8, %c0_9], %7 {strides = array<i32>} : memref<128x128xf32, #tpu.memory_space<vmem>>, vector<128x128xf32>,
    return
  }
  func.func @transform_0(%arg0: i32) -> (i32, i32) {
    %c0_i32 = arith.constant 0 : i32
    %c0_i32_0 = arith.constant 0 : i32
    %c0_i32_1 = arith.constant 0 : i32
    return %c0_i32, %c0_i32_0 : i32, i32
  }
  func.func @transform_1(%arg0: i32) -> (i32, i32) {
    %c0_i32 = arith.constant 0 : i32
    %c0_i32_0 = arith.constant 0 : i32
    %c0_i32_1 = arith.constant 0 : i32
    return %c0_i32, %c0_i32_0 : i32, i32
  }
  func.func @transform_2(%arg0: i32) -> (i32, i32) {
    %c0_i32 = arith.constant 0 : i32
    %c0_i32_0 = arith.constant 0 : i32
    %c0_i32_1 = arith.constant 0 : i32
    return %c0_i32, %c0_i32_0 : i32, i32
  }
  func.func @transform_3(%arg0: i32) -> (i32, i32) {
    %c0_i32 = arith.constant 0 : i32
    %c0_i32_0 = arith.constant 0 : i32
    %c0_i32_1 = arith.constant 0 : i32
    return %c0_i32, %c0_i32_0 : i32, i32
  }
  func.func @transform_4(%arg0: i32) -> (i32, i32) {
    %c0_i32 = arith.constant 0 : i32
    %c0_i32_0 = arith.constant 0 : i32
    %c0_i32_1 = arith.constant 0 : i32
    return %c0_i32, %c0_i32_0 : i32, i32
  }
}

</mosaic_0001>

<llo_original>
// kernel: tpu_custom_call.1
$region0: #{tpu_custom_call.1}
  #allocation0 [shape = 'u32[]', space=smem, size = 0x4, offset = 0x4, fixed_abs, tag = 'smem constant byte address 0x4 - core index']
  #allocation1 [shape = 'u32[144,128]{1,0:T(1,128)}', space=vmem, size = 0x12000, scoped, tag = 'internal scratch']
  %s0 = inlined_call_operand.hbm [shape: bf16[128,128], index: 0, kind: input, shape index: {}]
  %s1 = inlined_call_operand.hbm [shape: bf16[128,128], index: 1, kind: input, shape index: {}]
  %s2 = inlined_call_operand.vmem [shape: f32[1,128], index: 2, kind: input, shape index: {}]
  %s3 = inlined_call_operand.hbm [shape: f32[128,128], index: 3, kind: input, shape index: {}]
  %s4 = inlined_call_operand.hbm [shape: f32[128,128], index: 4, kind: output, shape index: {}]
  %s5 = sld [smem:[#allocation0]]
  $region38: #{tpu_custom_call.1} parent=0
    _
  %s7 = ssub.s32 1, %s5
  %s8 = scalar_select 0, %s7, %s5
  $region1: #{tpu_custom_call.1} parent=0
    #allocation2 [shape = 'u8[32768]{0}', space=vmem, size = 0x8000, scoped, tag = 'input window, operand 0, single buffered']
    #allocation3 [shape = 's32[1]{0}', space=sflag, size = 0x4, scoped, tag = 'scoped memory for tpu_custom_call.1']
    #allocation4 [shape = 's32[1]{0}', space=sflag, size = 0x4, scoped, tag = 'scoped memory for tpu_custom_call.1']
    #allocation5 [shape = 'u8[32768]{0}', space=vmem, size = 0x8000, scoped, tag = 'input window, operand 1, single buffered']
    #allocation6 [shape = 's32[1]{0}', space=sflag, size = 0x4, scoped, tag = 'scoped memory for tpu_custom_call.1']
    #allocation7 [shape = 'u8[65536]{0}', space=vmem, size = 0x10000, scoped, tag = 'input window, operand 3, single buffered']
    #allocation8 [shape = 'u8[65536]{0}', space=vmem, size = 0x10000, scoped, tag = 'output window, operand 0, single buffered']
    %9 = vsyncpa [#allocation3], 0
    %10 = vsyncpa [#allocation6], 0
    %11 = vsyncpa [#allocation4], 0
    // Predicated region
    $region2: #{tpu_custom_call.1} parent=1 // pred_check
      _
    $region3: #{tpu_custom_call.1} parent=1 // pred_check_branch
      %13 = sbr.rel (0) target = $region5
    $region4: #{tpu_custom_call.1} parent=1 // pred_region
      %s15 = ssub.s32 1024, 1024
      %16 = vsyncadd [#allocation3], %s15
      %s17 = sshll.u32 [#allocation2], 4
      %s18 = int_to_ptr.vmem [resolvable:$true] %s17
      %23 = dma.hbm_to_vmem [thread:$0]  %s0, 1024, %s18, [#allocation3], 64, 64, 4
    $region5: #{tpu_custom_call.1} parent=1 // pred_fallthru
      _
    // Predicated region
    $region6: #{tpu_custom_call.1} parent=1 // pred_check
      _
    $region7: #{tpu_custom_call.1} parent=1 // pred_check_branch
      %25 = sbr.rel (0) target = $region9
    $region8: #{tpu_custom_call.1} parent=1 // pred_region
      %s27 = ssub.s32 1024, 1024
      %28 = vsyncadd [#allocation6], %s27
      %s29 = sshll.u32 [#allocation5], 4
      %s30 = int_to_ptr.vmem [resolvable:$true] %s29
      %35 = dma.hbm_to_vmem [thread:$0]  %s1, 1024, %s30, [#allocation6], 64, 64, 4
    $region9: #{tpu_custom_call.1} parent=1 // pred_fallthru
      _
    // Predicated region
    $region10: #{tpu_custom_call.1} parent=1 // pred_check
      _
    $region11: #{tpu_custom_call.1} parent=1 // pred_check_branch
      %37 = sbr.rel (0) target = $region13
    $region12: #{tpu_custom_call.1} parent=1 // pred_region
      _
    $region13: #{tpu_custom_call.1} parent=1 // pred_fallthru
      _
    // Predicated region
    $region14: #{tpu_custom_call.1} parent=1 // pred_check
      _
    $region15: #{tpu_custom_call.1} parent=1 // pred_check_branch
      %39 = sbr.rel (0) target = $region17
    $region16: #{tpu_custom_call.1} parent=1 // pred_region
      %s41 = ssub.s32 2048, 2048
      %42 = vsyncadd [#allocation6], %s41
      %s43 = sshll.u32 [#allocation7], 4
      %s44 = int_to_ptr.vmem [resolvable:$true] %s43
      %49 = dma.hbm_to_vmem [thread:$0]  %s3, 2048, %s44, [#allocation6], 128, 128, 8
    $region17: #{tpu_custom_call.1} parent=1 // pred_fallthru
      _
    // Predicated region
    $region18: #{tpu_custom_call.1} parent=1 // pred_check
      _
    $region19: #{tpu_custom_call.1} parent=1 // pred_check_branch
      %51 = sbr.rel (0) target = $region21
    $region20: #{tpu_custom_call.1} parent=1 // pred_region
      %52 = dma.done [#allocation3], 1024
    $region21: #{tpu_custom_call.1} parent=1 // pred_fallthru
      _
    // Predicated region
    $region22: #{tpu_custom_call.1} parent=1 // pred_check
      _
    $region23: #{tpu_custom_call.1} parent=1 // pred_check_branch
      %54 = sbr.rel (0) target = $region25
    $region24: #{tpu_custom_call.1} parent=1 // pred_region
      %55 = dma.done [#allocation6], 1024
    $region25: #{tpu_custom_call.1} parent=1 // pred_fallthru
      _
    // Predicated region
    $region26: #{tpu_custom_call.1} parent=1 // pred_check
      _
    $region27: #{tpu_custom_call.1} parent=1 // pred_check_branch
      %57 = sbr.rel (0) target = $region29
    $region28: #{tpu_custom_call.1} parent=1 // pred_region
      %58 = dma.done [#allocation6], 2048
    $region29: #{tpu_custom_call.1} parent=1 // pred_fallthru
      _
    %v60 = vld [vmem:[#allocation2] sm:$0xf]
    %v61 = vld [vmem:[#allocation2 + $0x4] sm:$0xf]
    %v62 = vld [vmem:[#allocation2 + $0x8] sm:$0xf]
    %v63 = vld [vmem:[#allocation2 + $0xc] sm:$0xf]
    %v64 = vld [vmem:[#allocation2 + $0x10] sm:$0xf]
    %v65 = vld [vmem:[#allocation2 + $0x14] sm:$0xf]
    %v66 = vld [vmem:[#allocation2 + $0x18] sm:$0xf]
    %v67 = vld [vmem:[#allocation2 + $0x1c] sm:$0xf]
    %v68 = vld [vmem:[#allocation2 + $0x20] sm:$0xf]
    %v69 = vld [vmem:[#allocation2 + $0x24] sm:$0xf]
    %v70 = vld [vmem:[#allocation2 + $0x28] sm:$0xf]
    %v71 = vld [vmem:[#allocation2 + $0x2c] sm:$0xf]
    %v72 = vld [vmem:[#allocation2 + $0x30] sm:$0xf]
    %v73 = vld [vmem:[#allocation2 + $0x34] sm:$0xf]
    %v74 = vld [vmem:[#allocation2 + $0x38] sm:$0xf]
    %v75 = vld [vmem:[#allocation2 + $0x3c] sm:$0xf]
    %v76 = vld [vmem:[#allocation5] sm:$0xf]
    %v77 = vld [vmem:[#allocation5 + $0x4] sm:$0xf]
    %v78 = vld [vmem:[#allocation5 + $0x8] sm:$0xf]
    %v79 = vld [vmem:[#allocation5 + $0xc] sm:$0xf]
    %v80 = vld [vmem:[#allocation5 + $0x10] sm:$0xf]
    %v81 = vld [vmem:[#allocation5 + $0x14] sm:$0xf]
    %v82 = vld [vmem:[#allocation5 + $0x18] sm:$0xf]
    %v83 = vld [vmem:[#allocation5 + $0x1c] sm:$0xf]
    %v84 = vld [vmem:[#allocation5 + $0x20] sm:$0xf]
    %v85 = vld [vmem:[#allocation5 + $0x24] sm:$0xf]
    %v86 = vld [vmem:[#allocation5 + $0x28] sm:$0xf]
    %v87 = vld [vmem:[#allocation5 + $0x2c] sm:$0xf]
    %v88 = vld [vmem:[#allocation5 + $0x30] sm:$0xf]
    %v89 = vld [vmem:[#allocation5 + $0x34] sm:$0xf]
    %v90 = vld [vmem:[#allocation5 + $0x38] sm:$0xf]
    %v91 = vld [vmem:[#allocation5 + $0x3c] sm:$0xf]
    %v92 = vld [vmem:[%s2] sm:$0x1]
    %v94 = vlaneseq
    %v95 = vshrl.u32 %v94, 7
    %v96 = vsub.s32 0, %v95
    %v97 = vrot.slane %v92, %v96
    %v115 = vunpack.c.l.b16 %v60
    %v116 = vunpack.c.l.b16 %v61
    %v117 = vunpack.c.l.b16 %v62
    %v118 = vunpack.c.l.b16 %v63
    %v119 = vunpack.c.l.b16 %v64
    %v120 = vunpack.c.l.b16 %v65
    %v121 = vunpack.c.l.b16 %v66
    %v122 = vunpack.c.l.b16 %v67
    %v123 = vunpack.c.l.b16 %v68
    %v124 = vunpack.c.l.b16 %v69
    %v125 = vunpack.c.l.b16 %v70
    %v126 = vunpack.c.l.b16 %v71
    %v127 = vunpack.c.l.b16 %v72
    %v128 = vunpack.c.l.b16 %v73
    %v129 = vunpack.c.l.b16 %v74
    %v130 = vunpack.c.l.b16 %v75
    %v131 = vpack.c.b16 %v116, %v115
    %v132 = vpack.c.b16 %v118, %v117
    %v133 = vpack.c.b16 %v120, %v119
    %v134 = vpack.c.b16 %v122, %v121
    %v135 = vpack.c.b16 %v124, %v123
    %v136 = vpack.c.b16 %v126, %v125
    %v137 = vpack.c.b16 %v128, %v127
    %v138 = vpack.c.b16 %v130, %v129
    %v163 = vunpack.c.l.b16 %v76
    %v164 = vunpack.c.l.b16 %v77
    %v165 = vunpack.c.l.b16 %v78
    %v166 = vunpack.c.l.b16 %v79
    %v167 = vunpack.c.l.b16 %v80
    %v168 = vunpack.c.l.b16 %v81
    %v169 = vunpack.c.l.b16 %v82
    %v170 = vunpack.c.l.b16 %v83
    %v171 = vunpack.c.l.b16 %v84
    %v172 = vunpack.c.l.b16 %v85
    %v173 = vunpack.c.l.b16 %v86
    %v174 = vunpack.c.l.b16 %v87
    %v175 = vunpack.c.l.b16 %v88
    %v176 = vunpack.c.l.b16 %v89
    %v177 = vunpack.c.l.b16 %v90
    %v178 = vunpack.c.l.b16 %v91
    %v179 = vpack.c.b16 %v164, %v163
    %v180 = vpack.c.b16 %v166, %v165
    %v181 = vpack.c.b16 %v168, %v167
    %v182 = vpack.c.b16 %v170, %v169
    %v183 = vpack.c.b16 %v172, %v171
    %v184 = vpack.c.b16 %v174, %v173
    %v185 = vpack.c.b16 %v176, %v175
    %v186 = vpack.c.b16 %v178, %v177
    %195 = vmatprep.subr.bf16.mxu0 0
    %196 = vmatpush1.bf16.msra.mxu0 %v179
    %197 = vmatprep.subr.bf16.mxu0 0
    %198 = vmatpush1.bf16.msra.mxu0 %v180
    %199 = vmatprep.subr.bf16.mxu0 0
    %200 = vmatpush1.bf16.msra.mxu0 %v181
    %201 = vmatprep.subr.bf16.mxu0 0
    %202 = vmatpush1.bf16.msra.mxu0 %v182
    %203 = vmatprep.subr.bf16.mxu0 0
    %204 = vmatpush1.bf16.msra.mxu0 %v183
    %205 = vmatprep.subr.bf16.mxu0 0
    %206 = vmatpush1.bf16.msra.mxu0 %v184
    %207 = vmatprep.subr.bf16.mxu0 0
    %208 = vmatpush1.bf16.msra.mxu0 %v185
    %209 = vmatprep.subr.bf16.mxu0 0
    %210 = vmatpush1.bf16.msra.mxu0 %v186
    %211 = vmatprep.subr.bf16.mxu0 0
    %212 = vmatpush1.bf16.msra.mxu0 0
    %213 = vmatprep.subr.bf16.mxu0 0
    %214 = vmatpush1.bf16.msra.mxu0 0
    %215 = vmatprep.subr.bf16.mxu0 0
    %216 = vmatpush1.bf16.msra.mxu0 0
    %217 = vmatprep.subr.bf16.mxu0 0
    %218 = vmatpush1.bf16.msra.mxu0 0
    %219 = vmatprep.subr.bf16.mxu0 0
    %220 = vmatpush1.bf16.msra.mxu0 0
    %221 = vmatprep.subr.bf16.mxu0 0
    %222 = vmatpush1.bf16.msra.mxu0 0
    %223 = vmatprep.subr.bf16.mxu0 0
    %224 = vmatpush1.bf16.msra.mxu0 0
    %225 = vmatprep.subr.bf16.mxu0 0
    %226 = vmatpush1.bf16.msra.mxu0 0
    %227 = vmatprep.mubr.bf16.mxu0 0
    %228 = vmatmul.mubr.bf16.gmra.mrb[0].mxu0 %v131
    %v229 = vpop.f32.mrb[0].mxu0
    %v230 = vadd.f32 %v97, %v229
    %v231 = vpop.f32.mrb[0].mxu0
    %v232 = vpop.f32.mrb[0].mxu0
    %v233 = vadd.f32 %v97, %v232
    %v234 = vpop.f32.mrb[0].mxu0
    %235 = vmatprep.mubr.bf16.mxu0 0
    %236 = vmatmul.mubr.bf16.gmra.mrb[0].mxu0 %v132
    %v237 = vpop.f32.mrb[0].mxu0
    %v238 = vadd.f32 %v97, %v237
    %v239 = vpop.f32.mrb[0].mxu0
    %v240 = vpop.f32.mrb[0].mxu0
    %v241 = vadd.f32 %v97, %v240
    %v242 = vpop.f32.mrb[0].mxu0
    %243 = vmatprep.mubr.bf16.mxu0 0
    %244 = vmatmul.mubr.bf16.gmra.mrb[0].mxu0 %v133
    %v245 = vpop.f32.mrb[0].mxu0
    %v246 = vadd.f32 %v97, %v245
    %v247 = vpop.f32.mrb[0].mxu0
    %v248 = vpop.f32.mrb[0].mxu0
    %v249 = vadd.f32 %v97, %v248
    %v250 = vpop.f32.mrb[0].mxu0
    %251 = vmatprep.mubr.bf16.mxu0 0
    %252 = vmatmul.mubr.bf16.gmra.mrb[0].mxu0 %v134
    %v253 = vpop.f32.mrb[0].mxu0
    %v254 = vadd.f32 %v97, %v253
    %v255 = vpop.f32.mrb[0].mxu0
    %v256 = vpop.f32.mrb[0].mxu0
    %v257 = vadd.f32 %v97, %v256
    %v258 = vpop.f32.mrb[0].mxu0
    %259 = vmatprep.mubr.bf16.mxu0 0
    %260 = vmatmul.mubr.bf16.gmra.mrb[0].mxu0 %v135
    %v261 = vpop.f32.mrb[0].mxu0
    %v262 = vadd.f32 %v97, %v261
    %v263 = vpop.f32.mrb[0].mxu0
    %v264 = vpop.f32.mrb[0].mxu0
    %v265 = vadd.f32 %v97, %v264
    %v266 = vpop.f32.mrb[0].mxu0
    %267 = vmatprep.mubr.bf16.mxu0 0
    %268 = vmatmul.mubr.bf16.gmra.mrb[0].mxu0 %v136
    %v269 = vpop.f32.mrb[0].mxu0
    %v270 = vadd.f32 %v97, %v269
    %v271 = vpop.f32.mrb[0].mxu0
    %v272 = vpop.f32.mrb[0].mxu0
    %v273 = vadd.f32 %v97, %v272
    %v274 = vpop.f32.mrb[0].mxu0
    %275 = vmatprep.mubr.bf16.mxu0 0
    %276 = vmatmul.mubr.bf16.gmra.mrb[0].mxu0 %v137
    %v277 = vpop.f32.mrb[0].mxu0
    %v278 = vadd.f32 %v97, %v277
    %v279 = vpop.f32.mrb[0].mxu0
    %v280 = vpop.f32.mrb[0].mxu0
    %v281 = vadd.f32 %v97, %v280
    %v282 = vpop.f32.mrb[0].mxu0
    %283 = vmatprep.mubr.bf16.mxu0 0
    %284 = vmatmul.mubr.bf16.gmra.mrb[0].mxu0 %v138
    %v285 = vpop.f32.mrb[0].mxu0
    %v286 = vadd.f32 %v97, %v285
    %v287 = vpop.f32.mrb[0].mxu0
    %v288 = vpop.f32.mrb[0].mxu0
    %v289 = vadd.f32 %v97, %v288
    %v290 = vpop.f32.mrb[0].mxu0
    %291 = vdwg.mxu0
    %v292 = vld [vmem:[#allocation7] sm:$0xff]
    %v293 = vld [vmem:[#allocation7 + $0x8] sm:$0xff]
    %v294 = vld [vmem:[#allocation7 + $0x10] sm:$0xff]
    %v295 = vld [vmem:[#allocation7 + $0x18] sm:$0xff]
    %v296 = vld [vmem:[#allocation7 + $0x20] sm:$0xff]
    %v297 = vld [vmem:[#allocation7 + $0x28] sm:$0xff]
    %v298 = vld [vmem:[#allocation7 + $0x30] sm:$0xff]
    %v299 = vld [vmem:[#allocation7 + $0x38] sm:$0xff]
    %v300 = vld [vmem:[#allocation7 + $0x40] sm:$0xff]
    %v301 = vld [vmem:[#allocation7 + $0x48] sm:$0xff]
    %v302 = vld [vmem:[#allocation7 + $0x50] sm:$0xff]
    %v303 = vld [vmem:[#allocation7 + $0x58] sm:$0xff]
    %v304 = vld [vmem:[#allocation7 + $0x60] sm:$0xff]
    %v305 = vld [vmem:[#allocation7 + $0x68] sm:$0xff]
    %v306 = vld [vmem:[#allocation7 + $0x70] sm:$0xff]
    %v307 = vld [vmem:[#allocation7 + $0x78] sm:$0xff]
    %308 = vmatprep.subr.mxu0 0.0
    %309 = vmatpush1.msra.mxu0 %v230
    %310 = vmatprep.subr.mxu0 0.0
    %311 = vmatpush1.msra.mxu0 %v233
    %312 = vmatprep.subr.mxu0 0.0
    %313 = vmatpush1.msra.mxu0 %v238
    %314 = vmatprep.subr.mxu0 0.0
    %315 = vmatpush1.msra.mxu0 %v241
    %316 = vmatprep.subr.mxu0 0.0
    %317 = vmatpush1.msra.mxu0 %v246
    %318 = vmatprep.subr.mxu0 0.0
    %319 = vmatpush1.msra.mxu0 %v249
    %320 = vmatprep.subr.mxu0 0.0
    %321 = vmatpush1.msra.mxu0 %v254
    %322 = vmatprep.subr.mxu0 0.0
    %323 = vmatpush1.msra.mxu0 %v257
    %324 = vmatprep.subr.mxu0 0.0
    %325 = vmatpush1.msra.mxu0 %v262
    %326 = vmatprep.subr.mxu0 0.0
    %327 = vmatpush1.msra.mxu0 %v265
    %328 = vmatprep.subr.mxu0 0.0
    %329 = vmatpush1.msra.mxu0 %v270
    %330 = vmatprep.subr.mxu0 0.0
    %331 = vmatpush1.msra.mxu0 %v273
    %332 = vmatprep.subr.mxu0 0.0
    %333 = vmatpush1.msra.mxu0 %v278
    %334 = vmatprep.subr.mxu0 0.0
    %335 = vmatpush1.msra.mxu0 %v281
    %336 = vmatprep.subr.mxu0 0.0
    %337 = vmatpush1.msra.mxu0 %v286
    %338 = vmatprep.subr.mxu0 0.0
    %339 = vmatpush1.msra.mxu0 %v289
    %340 = vmatprep.subr.mxu0 0.0
    %341 = vmatpush1.msra.mxu0 0.0
    %342 = vmatprep.subr.mxu0 0.0
    %343 = vmatpush1.msra.mxu0 0.0
    %344 = vmatprep.subr.mxu0 0.0
    %345 = vmatpush1.msra.mxu0 0.0
    %346 = vmatprep.subr.mxu0 0.0
    %347 = vmatpush1.msra.mxu0 0.0
    %348 = vmatprep.subr.mxu0 0.0
    %349 = vmatpush1.msra.mxu0 0.0
    %350 = vmatprep.subr.mxu0 0.0
    %351 = vmatpush1.msra.mxu0 0.0
    %352 = vmatprep.subr.mxu0 0.0
    %353 = vmatpush1.msra.mxu0 0.0
    %354 = vmatprep.subr.mxu0 0.0
    %355 = vmatpush1.msra.mxu0 0.0
    %356 = vmatprep.subr.mxu0 0.0
    %357 = vmatpush1.msra.mxu0 0.0
    %358 = vmatprep.subr.mxu0 0.0
    %359 = vmatpush1.msra.mxu0 0.0
    %360 = vmatprep.subr.mxu0 0.0
    %361 = vmatpush1.msra.mxu0 0.0
    %362 = vmatprep.subr.mxu0 0.0
    %363 = vmatpush1.msra.mxu0 0.0
    %364 = vmatprep.subr.mxu0 0.0
    %365 = vmatpush1.msra.mxu0 0.0
    %366 = vmatprep.subr.mxu0 0.0
    %367 = vmatpush1.msra.mxu0 0.0
    %368 = vmatprep.subr.mxu0 0.0
    %369 = vmatpush1.msra.mxu0 0.0
    %370 = vmatprep.subr.mxu0 0.0
    %371 = vmatpush1.msra.mxu0 0.0
    %372 = vmatprep.mubr.f32.mxu0 0.0
    %373 = vmatmul.mubr.f32.gmra.mrb[0].mxu0 %v292
    %v374 = vpop.f32.mrb[0].mxu0
    %v375 = vadd.f32 0.0, %v374
    %v376 = vpop.f32.mrb[0].mxu0
    %377 = vmatprep.mubr.f32.mxu0 0.0
    %378 = vmatmul.mubr.f32.gmra.mrb[0].mxu0 %v293
    %v379 = vpop.f32.mrb[0].mxu0
    %v380 = vadd.f32 0.0, %v379
    %v381 = vpop.f32.mrb[0].mxu0
    %382 = vmatprep.mubr.f32.mxu0 0.0
    %383 = vmatmul.mubr.f32.gmra.mrb[0].mxu0 %v294
    %v384 = vpop.f32.mrb[0].mxu0
    %v385 = vadd.f32 0.0, %v384
    %v386 = vpop.f32.mrb[0].mxu0
    %387 = vmatprep.mubr.f32.mxu0 0.0
    %388 = vmatmul.mubr.f32.gmra.mrb[0].mxu0 %v295
    %v389 = vpop.f32.mrb[0].mxu0
    %v390 = vadd.f32 0.0, %v389
    %v391 = vpop.f32.mrb[0].mxu0
    %392 = vmatprep.mubr.f32.mxu0 0.0
    %393 = vmatmul.mubr.f32.gmra.mrb[0].mxu0 %v296
    %v394 = vpop.f32.mrb[0].mxu0
    %v395 = vadd.f32 0.0, %v394
    %v396 = vpop.f32.mrb[0].mxu0
    %397 = vmatprep.mubr.f32.mxu0 0.0
    %398 = vmatmul.mubr.f32.gmra.mrb[0].mxu0 %v297
    %v399 = vpop.f32.mrb[0].mxu0
    %v400 = vadd.f32 0.0, %v399
    %v401 = vpop.f32.mrb[0].mxu0
    %402 = vmatprep.mubr.f32.mxu0 0.0
    %403 = vmatmul.mubr.f32.gmra.mrb[0].mxu0 %v298
    %v404 = vpop.f32.mrb[0].mxu0
    %v405 = vadd.f32 0.0, %v404
    %v406 = vpop.f32.mrb[0].mxu0
    %407 = vmatprep.mubr.f32.mxu0 0.0
    %408 = vmatmul.mubr.f32.gmra.mrb[0].mxu0 %v299
    %v409 = vpop.f32.mrb[0].mxu0
    %v410 = vadd.f32 0.0, %v409
    %v411 = vpop.f32.mrb[0].mxu0
    %412 = vmatprep.mubr.f32.mxu0 0.0
    %413 = vmatmul.mubr.f32.gmra.mrb[0].mxu0 %v300
    %v414 = vpop.f32.mrb[0].mxu0
    %v415 = vadd.f32 0.0, %v414
    %v416 = vpop.f32.mrb[0].mxu0
    %417 = vmatprep.mubr.f32.mxu0 0.0
    %418 = vmatmul.mubr.f32.gmra.mrb[0].mxu0 %v301
    %v419 = vpop.f32.mrb[0].mxu0
    %v420 = vadd.f32 0.0, %v419
    %v421 = vpop.f32.mrb[0].mxu0
    %422 = vmatprep.mubr.f32.mxu0 0.0
    %423 = vmatmul.mubr.f32.gmra.mrb[0].mxu0 %v302
    %v424 = vpop.f32.mrb[0].mxu0
    %v425 = vadd.f32 0.0, %v424
    %v426 = vpop.f32.mrb[0].mxu0
    %427 = vmatprep.mubr.f32.mxu0 0.0
    %428 = vmatmul.mubr.f32.gmra.mrb[0].mxu0 %v303
    %v429 = vpop.f32.mrb[0].mxu0
    %v430 = vadd.f32 0.0, %v429
    %v431 = vpop.f32.mrb[0].mxu0
    %432 = vmatprep.mubr.f32.mxu0 0.0
    %433 = vmatmul.mubr.f32.gmra.mrb[0].mxu0 %v304
    %v434 = vpop.f32.mrb[0].mxu0
    %v435 = vadd.f32 0.0, %v434
    %v436 = vpop.f32.mrb[0].mxu0
    %437 = vmatprep.mubr.f32.mxu0 0.0
    %438 = vmatmul.mubr.f32.gmra.mrb[0].mxu0 %v305
    %v439 = vpop.f32.mrb[0].mxu0
    %v440 = vadd.f32 0.0, %v439
    %v441 = vpop.f32.mrb[0].mxu0
    %442 = vmatprep.mubr.f32.mxu0 0.0
    %443 = vmatmul.mubr.f32.gmra.mrb[0].mxu0 %v306
    %v444 = vpop.f32.mrb[0].mxu0
    %v445 = vadd.f32 0.0, %v444
    %v446 = vpop.f32.mrb[0].mxu0
    %447 = vmatprep.mubr.f32.mxu0 0.0
    %448 = vmatmul.mubr.f32.gmra.mrb[0].mxu0 %v307
    %v449 = vpop.f32.mrb[0].mxu0
    %v450 = vadd.f32 0.0, %v449
    %v451 = vpop.f32.mrb[0].mxu0
    %452 = vdwg.mxu0
    %453 = vst [vmem:[#allocation8] sm:$0xff] %v375
    %454 = vst [vmem:[#allocation8 + $0x8] sm:$0xff] %v380
    %455 = vst [vmem:[#allocation8 + $0x10] sm:$0xff] %v385
    %456 = vst [vmem:[#allocation8 + $0x18] sm:$0xff] %v390
    %457 = vst [vmem:[#allocation8 + $0x20] sm:$0xff] %v395
    %458 = vst [vmem:[#allocation8 + $0x28] sm:$0xff] %v400
    %459 = vst [vmem:[#allocation8 + $0x30] sm:$0xff] %v405
    %460 = vst [vmem:[#allocation8 + $0x38] sm:$0xff] %v410
    %461 = vst [vmem:[#allocation8 + $0x40] sm:$0xff] %v415
    %462 = vst [vmem:[#allocation8 + $0x48] sm:$0xff] %v420
    %463 = vst [vmem:[#allocation8 + $0x50] sm:$0xff] %v425
    %464 = vst [vmem:[#allocation8 + $0x58] sm:$0xff] %v430
    %465 = vst [vmem:[#allocation8 + $0x60] sm:$0xff] %v435
    %466 = vst [vmem:[#allocation8 + $0x68] sm:$0xff] %v440
    %467 = vst [vmem:[#allocation8 + $0x70] sm:$0xff] %v445
    %468 = vst [vmem:[#allocation8 + $0x78] sm:$0xff] %v450
    // Predicated region
    $region30: #{tpu_custom_call.1} parent=1 // pred_check
      _
    $region31: #{tpu_custom_call.1} parent=1 // pred_check_branch
      %470 = sbr.rel (0) target = $region33
    $region32: #{tpu_custom_call.1} parent=1 // pred_region
      %s472 = ssub.s32 2048, 2048
      %473 = vsyncadd [#allocation4], %s472
      %s474 = sshll.u32 [#allocation8], 4
      %s475 = int_to_ptr.vmem [resolvable:$true] %s474
      %480 = dma.vmem_to_hbm [thread:$0]  %s475, 2048, %s4, [#allocation4], 128, 128, 8
    $region33: #{tpu_custom_call.1} parent=1 // pred_fallthru
      _
    // Predicated region
    $region34: #{tpu_custom_call.1} parent=1 // pred_check
      _
    $region35: #{tpu_custom_call.1} parent=1 // pred_check_branch
      %482 = sbr.rel (0) target = $region37
    $region36: #{tpu_custom_call.1} parent=1 // pred_region
      %483 = dma.done [#allocation4], 2048
    $region37: #{tpu_custom_call.1} parent=1 // pred_fallthru
      _
    %484 = vsyncpa [#allocation3], 1
    %485 = vsyncpa [#allocation6], 1
    %486 = vsyncpa [#allocation4], 1

</llo_original>
